<compile_context>
chip_gen: v5e
topology: v5e:2x2
jax: 0.10.0
libtpu: 0.0.40
codegen_flags: <defaults>
</compile_context>

<pallas_src>
import jax
import jax.numpy as jnp
from jax.experimental import pallas as pl
from jax.experimental.pallas import tpu as pltpu  # noqa: F401  (kept for the scaling path)


# --------------------------------------------------------------------------- #
# Pallas kernel: pi = softmax(theta, 1);  ppi_aug = einsum('axy,xa->xy', P_aug, pi)
#   where P_aug[a, :, :Y] = P[:, a, :]  and  P_aug[a, :, Y] = r[:, a],
#   so ppi_aug[:, :Y] = p_pi  and  ppi_aug[:, Y] = r_pi.
# --------------------------------------------------------------------------- #
def _policy_fused_kernel(theta_ref, p_aug_ref, pi_ref, ppi_aug_ref):
    """theta_ref : (X, A)    p_aug_ref : (A, X, Y+1)
       pi_ref    : (X, A)    ppi_aug_ref: (X, Y+1)"""
    # --- numerically-stable row softmax (actions on the lane axis) ----------
    x = theta_ref[...]                                   # (X, A) f32
    m = jnp.max(x, axis=-1, keepdims=True)               # row max   (XLU)
    e = jnp.exp(x - m)                                   # exp       (EUP)
    s = jnp.sum(e, axis=-1, keepdims=True)               # row sum   (XLU)
    pi = e / s                                            # exact divide
    pi_ref[...] = pi.astype(pi_ref.dtype)

    # --- fused consumer: ppi_aug[x, y] = sum_a P_aug[a, x, y] * pi[x, a] ----
    # P_aug arrives as (A, X, Y+1): p_aug_ref[a] is a plain leading-axis load
    # of a full (X, Y+1) tile; pi[:, a:a+1] lane-broadcasts across Y+1.
    # A is tiny and static, so the Python loop fully unrolls at trace time.
    n_act = pi.shape[-1]
    acc = p_aug_ref[0] * pi[:, 0:1]
    for a in range(1, n_act):
        acc = acc + p_aug_ref[a] * pi[:, a:a + 1]
    ppi_aug_ref[...] = acc.astype(ppi_aug_ref.dtype)


def _fused_policy_call(theta, P_aug):
    """theta (X, A), P_aug (A, X, Y+1) -> (pi (X, A), ppi_aug (X, Y+1))."""
    n_obs, n_act = theta.shape
    y_aug = P_aug.shape[-1]
    out_shape = (
        jax.ShapeDtypeStruct((n_obs, n_act), theta.dtype),    # pi
        jax.ShapeDtypeStruct((n_obs, y_aug), theta.dtype),    # [p_pi | r_pi]
    )
    return pl.pallas_call(
        _policy_fused_kernel,
        out_shape=out_shape,
        in_specs=[
            pl.BlockSpec((n_obs, n_act), lambda: (0, 0)),
            pl.BlockSpec((n_act, n_obs, y_aug), lambda: (0, 0, 0)),
        ],
        out_specs=(
            pl.BlockSpec((n_obs, n_act), lambda: (0, 0)),
            pl.BlockSpec((n_obs, y_aug), lambda: (0, 0)),
        ),
    )(theta, P_aug)


# forward()-only path: one dispatch, returns pi plus the cached contractions.
@jax.jit
def _forward_jit(theta, P_aug):
    pi, ppi_aug = _fused_policy_call(theta, P_aug)
    n_obs = theta.shape[0]
    return pi, ppi_aug[:, :n_obs], ppi_aug[:, n_obs]


# Full policy-evaluation step fused under ONE jit: Pallas call + both 17x17
# solves + qpi einsum + dpi normalization + J.  Single host dispatch.
@jax.jit
def _full_update_jit(theta, P_aug, P, mu, r, gamma):
    pi, ppi_aug = _fused_policy_call(theta, P_aug)
    n_obs = theta.shape[0]
    p_pi = ppi_aug[:, :n_obs]
    r_pi = ppi_aug[:, n_obs]
    A = jnp.eye(n_obs, dtype=theta.dtype) - gamma * p_pi
    # TODO(synk): torch.linalg.solve has no Pallas equivalent; dense solves stay in XLA
    # (but inside the same jit, so no extra dispatch).
    vpi = jnp.linalg.solve(A, r_pi)
    qpi = r + gamma * jnp.einsum('xay,y->xa', P, vpi)
    d_pi = (1.0 - gamma) * jnp.linalg.solve(A.T, mu)
    dpi = d_pi / jnp.sum(d_pi)
    J = jnp.sum(mu * jnp.sum(qpi * pi, axis=1))
    return pi, p_pi, r_pi, vpi, qpi, dpi, J


class Policy:
    """JAX/Pallas port of utils/Policy.py.

    forward() (the softmax) is the Pallas hot path, fused in-kernel with the
    p_pi / r_pi contractions.  update_all() runs the entire policy-evaluation
    step (Pallas kernel + linear solves + qpi + dpi + J) under a single jit.
    """

    def __init__(self, n_states, n_actions, P, mu, gamma, r, seed=10):
        self.n_obs = n_states + 1                      # observation_space.n + 1
        self.n_actions = n_actions
        key = jax.random.PRNGKey(seed)
        # torch.rand -> uniform [0,1); deterministic synthetic init (f32 on TPU).
        self.theta = jax.random.uniform(
            key, (self.n_obs, self.n_actions), dtype=jnp.float32)
        self.total_states = self.n_obs * self.n_actions
        self.P = P
        self.mu = mu
        self.gamma = gamma
        self.r = r
        # P_aug[a, :, :Y] = P[:, a, :],  P_aug[a, :, Y] = r[:, a]  — built ONCE.
        self._P_aug = jnp.transpose(
            jnp.concatenate([P, r[:, :, None]], axis=-1), (1, 0, 2))
        self.start_state = int(jnp.argmax(self.mu))
        self.pi = None
        self.qpi = None
        self.vpi = None
        self.dpi = None
        self.dpis = None
        self._p_pi = None
        self._r_pi = None
        self._J = None

    # ---- forward: Pallas softmax (+ fused contractions, cached) ------------
    def forward(self):
        pi, p_pi, r_pi = _forward_jit(self.theta, self._P_aug)
        self.pi = pi
        self._p_pi = p_pi          # einsum('xay,xa->xy', P, pi), fused in-kernel
        self._r_pi = r_pi          # einsum('xa,xa->x',  r, pi),  fused in-kernel
        return self.pi

    # ---- policy-evaluation glue (single fused dispatch) ---------------------
    def update_all(self):
        (self.pi, self._p_pi, self._r_pi,
         self.vpi, self.qpi, self.dpi, self._J) = _full_update_jit(
            self.theta, self._P_aug, self.P, self.mu, self.r, self.gamma)

    def update_vpi(self):
        A = jnp.eye(self.n_obs, dtype=jnp.float32) - self.gamma * self._p_pi
        self.vpi = jnp.linalg.solve(A, self._r_pi)

    def update_qpi(self):
        self.qpi = self.r + self.gamma * jnp.einsum('xay,y->xa', self.P, self.vpi)

    def update_dpi(self):
        A = jnp.eye(self.n_obs, dtype=jnp.float32) - self.gamma * self._p_pi
        d_pi = (1.0 - self.gamma) * jnp.linalg.solve(A.T, self.mu)
        self.dpi = d_pi / jnp.sum(d_pi)

    def update_all_dpi(self):
        A = jnp.eye(self.n_obs, dtype=jnp.float32) - self.gamma * self._p_pi
        D = (1.0 - self.gamma) * jnp.linalg.solve(
            A.T, jnp.eye(self.n_obs, dtype=jnp.float32))   # column i = d_pi for mu=e_i
        D = D / jnp.sum(D, axis=0, keepdims=True)
        self.dpis = D.T
        self.dpi = self.dpis[self.start_state]

    def update_J(self):
        return jnp.sum(self.mu * jnp.sum(self.qpi * self.pi, axis=1))

    # TODO(synk): compute_jacobian / compute_grad_J rely on torch.autograd
    # functional jacobians; no clean Pallas equivalent, left unimplemented.


if __name__ == "__main__":
    # Small deterministic problem: 16 env states (+1 absorbing) and 4 actions.
    n_states, n_actions = 16, 4
    n_obs = n_states + 1

    key = jax.random.PRNGKey(0)
    kP, kmu, kr = jax.random.split(key, 3)

    # Transition tensor P[x, a, y], normalized over y.
    P = jax.random.uniform(kP, (n_obs, n_actions, n_obs), dtype=jnp.float32)
    P = P / jnp.sum(P, axis=-1, keepdims=True)
    # Initial-state distribution mu and reward table r[x, a].
    mu = jax.random.uniform(kmu, (n_obs,), dtype=jnp.float32)
    mu = mu / jnp.sum(mu)
    r = jax.random.uniform(kr, (n_obs, n_actions), dtype=jnp.float32)
    gamma = 0.9

    policy = Policy(n_states, n_actions, P, mu, gamma, r, seed=10)
    pi = policy.forward()
    pi = jax.block_until_ready(pi)

    # Reference checks (exact-divide softmax -> tight tolerances).
    ref_pi = jax.nn.softmax(policy.theta, axis=1)
    assert pi.shape == (n_obs, n_actions)
    assert jnp.allclose(pi, ref_pi, atol=1e-6), "Pallas fused softmax mismatch"
    assert jnp.allclose(jnp.sum(pi, axis=1), 1.0, atol=1e-5)

    ref_p_pi = jnp.einsum('xay,xa->xy', P, ref_pi)
    ref_r_pi = jnp.einsum('xa,xa->x', r, ref_pi)
    assert jnp.allclose(policy._p_pi, ref_p_pi, atol=1e-5), "fused p_pi mismatch"
    assert jnp.allclose(policy._r_pi, ref_r_pi, atol=1e-5), "fused r_pi mismatch"

    # Full fused policy-evaluation step (single dispatch).
    policy.update_all()
    jax.block_until_ready(policy.dpi)
    assert policy.vpi.shape == (n_obs,) and bool(jnp.all(jnp.isfinite(policy.vpi)))
    assert policy.qpi.shape == (n_obs, n_actions)
    assert policy.dpi.shape == (n_obs,)
    assert abs(float(jnp.sum(policy.dpi)) - 1.0) < 1e-4
    assert bool(jnp.isfinite(policy.update_J()))

    # Cross-check fused update against the reference XLA path.
    A_ref = jnp.eye(n_obs, dtype=jnp.float32) - gamma * ref_p_pi
    ref_vpi = jnp.linalg.solve(A_ref, ref_r_pi)
    ref_qpi = r + gamma * jnp.einsum('xay,y->xa', P, ref_vpi)
    ref_d = (1.0 - gamma) * jnp.linalg.solve(A_ref.T, mu)
    ref_dpi = ref_d / jnp.sum(ref_d)
    assert jnp.allclose(policy.vpi, ref_vpi, atol=1e-3), "fused vpi mismatch"
    assert jnp.allclose(policy.qpi, ref_qpi, atol=1e-3), "fused qpi mismatch"
    assert jnp.allclose(policy.dpi, ref_dpi, atol=1e-3), "fused dpi mismatch"

    print("KERNEL_OK")
</pallas_src>

<mosaic_0001>
module attributes {stable_mosaic.version = 11 : i64} {
  func.func @_policy_fused_kernel(%arg0: memref<17x4xf32, #tpu.memory_space<vmem>>, %arg1: memref<4x17x18xf32, #tpu.memory_space<vmem>>, %arg2: memref<17x4xf32, #tpu.memory_space<vmem>>, %arg3: memref<17x18xf32, #tpu.memory_space<vmem>>) attributes {dimension_semantics = [], scalar_prefetch = 0 : i64, scratch_operands = 0 : i64, tpu.core_type = #tpu.core_type<tc>} {
    %c0 = arith.constant 0 : index
    %c0_0 = arith.constant 0 : index
    %0 = vector.load %arg0[%c0, %c0_0] : memref<17x4xf32, #tpu.memory_space<vmem>>, vector<17x4xf32>
    %cst = arith.constant dense<0xFF800000> : vector<17xf32>
    %1 = vector.multi_reduction <maximumf>, %0, %cst [1] : vector<17x4xf32> to vector<17xf32>
    %2 = vector.shape_cast %1 : vector<17xf32> to vector<17x1xf32>
    %3 = vector.broadcast %2 : vector<17x1xf32> to vector<17x4xf32>
    %4 = arith.subf %0, %3 : vector<17x4xf32>
    %5 = math.exp %4 : vector<17x4xf32>
    %cst_1 = arith.constant dense<0.000000e+00> : vector<17xf32>
    %6 = vector.multi_reduction <add>, %5, %cst_1 [1] : vector<17x4xf32> to vector<17xf32>
    %7 = vector.shape_cast %6 : vector<17xf32> to vector<17x1xf32>
    %8 = vector.broadcast %7 : vector<17x1xf32> to vector<17x4xf32>
    %9 = arith.divf %5, %8 : vector<17x4xf32>
    %c0_2 = arith.constant 0 : index
    %c0_3 = arith.constant 0 : index
    %10 = vector.load %arg2[%c0_2, %c0_3] : memref<17x4xf32, #tpu.memory_space<vmem>>, vector<17x4xf32>
    tpu.vector_store %arg2[%c0_2, %c0_3], %9 {strides = array<i32>} : memref<17x4xf32, #tpu.memory_space<vmem>>, vector<17x4xf32>,
    %c0_4 = arith.constant 0 : index
    %c0_5 = arith.constant 0 : index
    %c0_6 = arith.constant 0 : index
    %11 = vector.load %arg1[%c0_4, %c0_5, %c0_6] : memref<4x17x18xf32, #tpu.memory_space<vmem>>, vector<1x17x18xf32>
    %12 = vector.shape_cast %11 : vector<1x17x18xf32> to vector<17x18xf32>
    %13 = vector.extract_strided_slice %9 {offsets = [0, 0], sizes = [17, 1], strides = [1, 1]} : vector<17x4xf32> to vector<17x1xf32>
    %14 = vector.broadcast %13 : vector<17x1xf32> to vector<17x18xf32>
    %15 = arith.mulf %12, %14 : vector<17x18xf32>
    %c1 = arith.constant 1 : index
    %c0_7 = arith.constant 0 : index
    %c0_8 = arith.constant 0 : index
    %16 = vector.load %arg1[%c1, %c0_7, %c0_8] : memref<4x17x18xf32, #tpu.memory_space<vmem>>, vector<1x17x18xf32>
    %17 = vector.shape_cast %16 : vector<1x17x18xf32> to vector<17x18xf32>
    %18 = vector.extract_strided_slice %9 {offsets = [0, 1], sizes = [17, 1], strides = [1, 1]} : vector<17x4xf32> to vector<17x1xf32>
    %19 = vector.broadcast %18 : vector<17x1xf32> to vector<17x18xf32>
    %20 = arith.mulf %17, %19 : vector<17x18xf32>
    %21 = arith.addf %15, %20 : vector<17x18xf32>
    %c2 = arith.constant 2 : index
    %c0_9 = arith.constant 0 : index
    %c0_10 = arith.constant 0 : index
    %22 = vector.load %arg1[%c2, %c0_9, %c0_10] : memref<4x17x18xf32, #tpu.memory_space<vmem>>, vector<1x17x18xf32>
    %23 = vector.shape_cast %22 : vector<1x17x18xf32> to vector<17x18xf32>
    %24 = vector.extract_strided_slice %9 {offsets = [0, 2], sizes = [17, 1], strides = [1, 1]} : vector<17x4xf32> to vector<17x1xf32>
    %25 = vector.broadcast %24 : vector<17x1xf32> to vector<17x18xf32>
    %26 = arith.mulf %23, %25 : vector<17x18xf32>
    %27 = arith.addf %21, %26 : vector<17x18xf32>
    %c3 = arith.constant 3 : index
    %c0_11 = arith.constant 0 : index
    %c0_12 = arith.constant 0 : index
    %28 = vector.load %arg1[%c3, %c0_11, %c0_12] : memref<4x17x18xf32, #tpu.memory_space<vmem>>, vector<1x17x18xf32>
    %29 = vector.shape_cast %28 : vector<1x17x18xf32> to vector<17x18xf32>
    %30 = vector.extract_strided_slice %9 {offsets = [0, 3], sizes = [17, 1], strides = [1, 1]} : vector<17x4xf32> to vector<17x1xf32>
    %31 = vector.broadcast %30 : vector<17x1xf32> to vector<17x18xf32>
    %32 = arith.mulf %29, %31 : vector<17x18xf32>
    %33 = arith.addf %27, %32 : vector<17x18xf32>
    %c0_13 = arith.constant 0 : index
    %c0_14 = arith.constant 0 : index
    %34 = vector.load %arg3[%c0_13, %c0_14] : memref<17x18xf32, #tpu.memory_space<vmem>>, vector<17x18xf32>
    tpu.vector_store %arg3[%c0_13, %c0_14], %33 {strides = array<i32>} : memref<17x18xf32, #tpu.memory_space<vmem>>, vector<17x18xf32>,
    return
  }
}

</mosaic_0001>

<llo_original>
// kernel: _forward_jit.1
$region0: #{_forward_jit.1}
  #allocation0 [shape = 'u32[]', space=smem, size = 0x4, offset = 0x4, fixed_abs, tag = 'smem constant byte address 0x4 - core index']
  #allocation1 [shape = 'u32[72,128]{1,0:T(1,128)}', space=vmem, size = 0x9000, scoped, tag = 'internal scratch']
  %s0 = inlined_call_operand.vmem [shape: f32[17,4], index: 0, kind: input, shape index: {}]
  %s1 = inlined_call_operand.vmem [shape: f32[4,17,18], index: 1, kind: input, shape index: {}]
  %s2 = inlined_call_operand.vmem [shape: f32[17,4], index: 2, kind: output, shape index: {0}]
  %s3 = inlined_call_operand.vmem [shape: f32[17,18], index: 3, kind: output, shape index: {1}]
  %4 = xla_tuple %s2, %s3
  %s5 = sld [smem:[#allocation0]]
  $region26: #{_forward_jit.1} parent=0
    _
  %s7 = ssub.s32 1, %s5
  %s8 = scalar_select 0, %s7, %s5
  // Predicated region
  $region2: #{_forward_jit.1} parent=0 // pred_check
    _
  $region3: #{_forward_jit.1} parent=0 // pred_check_branch
    %10 = sbr.rel (0) target = $region5
  $region4: #{_forward_jit.1} parent=0 // pred_region
    _
  $region5: #{_forward_jit.1} parent=0 // pred_fallthru
    _
  // Predicated region
  $region6: #{_forward_jit.1} parent=0 // pred_check
    _
  $region7: #{_forward_jit.1} parent=0 // pred_check_branch
    %12 = sbr.rel (0) target = $region9
  $region8: #{_forward_jit.1} parent=0 // pred_region
    _
  $region9: #{_forward_jit.1} parent=0 // pred_fallthru
    _
  %v13 = vld [vmem:[%s0] sm:$0xff]
  %v14 = vld [vmem:[%s0 + $0x8] sm:$0xff]
  %v15 = vld [vmem:[%s0 + $0x10] sm:$0x1]
  %vm16 = vcmask 31744
  %v17 = vsel %vm16, %v13, -inf
  %18 = vmax.xlane.f32.xlu0 %v17
  %v19 = vpop.xlane.xlu0 %18
  %v20 = vsel %vm16, %v14, -inf
  %21 = vmax.xlane.f32.xlu0 %v20
  %v22 = vpop.xlane.xlu0 %21
  %vm23 = vcmask 24576
  %v24 = vsel %vm23, %v15, -inf
  %25 = vmax.xlane.f32.xlu0 %v24
  %v26 = vpop.xlane.xlu0 %25
  %v27 = vsub.f32 %v13, %v19
  %v28 = vsub.f32 %v14, %v22
  %v29 = vsub.f32 %v15, %v26
  %v30 = vmul.f32 %v27, 1.442695
  %v31 = vpow.pop %v30
  %v32 = vmul.f32 %v28, 1.442695
  %v33 = vpow.pop %v32
  %v34 = vmul.f32 %v29, 1.442695
  %v35 = vpow.pop %v34
  %v36 = vsel %vm16, %v31, 0.0
  %37 = vadd.xlane.f32.xlu0 %v36
  %v38 = vpop.xlane.xlu0 %37
  %v39 = vsel %vm16, %v33, 0.0
  %40 = vadd.xlane.f32.xlu0 %v39
  %v41 = vpop.xlane.xlu0 %40
  %v42 = vsel %vm23, %v35, 0.0
  %43 = vadd.xlane.f32.xlu0 %v42
  %v44 = vpop.xlane.xlu0 %43
  %v45 = vrcp.pop %v38
  %v46 = vmul.f32 %v38, %v45
  %v47 = vsub.f32 1.0, %v46
  %v48 = vmul.f32 %v45, %v47
  %v49 = vadd.f32 %v45, %v48
  %vm50 = vweird.f32 %v38
  %vm51 = vweird.f32 %v45
  %vm52 = vmor %vm50, %vm51
  %v53 = vsel %vm52, %v45, %v49
  %v54 = vand.u32 2147483647, %v38
  %vm55 = vcmp.eq.f32.partialorder %v54, 8.507059e+37
  %v56 = vand.u32 %v38, 2147483648
  %v57 = vor.u32 1.1754944e-38, %v56
  %v58 = vsel %vm55, %v57, %v53
  %v59 = vmul.f32 %v31, %v58
  %v60 = vrcp.pop %v41
  %v61 = vmul.f32 %v41, %v60
  %v62 = vsub.f32 1.0, %v61
  %v63 = vmul.f32 %v60, %v62
  %v64 = vadd.f32 %v60, %v63
  %vm65 = vweird.f32 %v41
  %vm66 = vweird.f32 %v60
  %vm67 = vmor %vm65, %vm66
  %v68 = vsel %vm67, %v60, %v64
  %v69 = vand.u32 2147483647, %v41
  %vm70 = vcmp.eq.f32.partialorder %v69, 8.507059e+37
  %v71 = vand.u32 %v41, 2147483648
  %v72 = vor.u32 1.1754944e-38, %v71
  %v73 = vsel %vm70, %v72, %v68
  %v74 = vmul.f32 %v33, %v73
  %v75 = vrcp.pop %v44
  %v76 = vmul.f32 %v44, %v75
  %v77 = vsub.f32 1.0, %v76
  %v78 = vmul.f32 %v75, %v77
  %v79 = vadd.f32 %v75, %v78
  %vm80 = vweird.f32 %v44
  %vm81 = vweird.f32 %v75
  %vm82 = vmor %vm80, %vm81
  %v83 = vsel %vm82, %v75, %v79
  %v84 = vand.u32 2147483647, %v44
  %vm85 = vcmp.eq.f32.partialorder %v84, 8.507059e+37
  %v86 = vand.u32 %v44, 2147483648
  %v87 = vor.u32 1.1754944e-38, %v86
  %v88 = vsel %vm85, %v87, %v83
  %v89 = vmul.f32 %v35, %v88
  %90 = vst.msk [vmem:[%s2] sm:$0xff] %vm16, %v59
  %91 = vst.msk [vmem:[%s2 + $0x8] sm:$0xff] %vm16, %v74
  %92 = vst.msk [vmem:[%s2 + $0x10] sm:$0x1] %vm23, %v89
  %v93 = vld [vmem:[%s1] sm:$0xff]
  %v94 = vld [vmem:[%s1 + $0x8] sm:$0xff]
  %v95 = vld [vmem:[%s1 + $0x10] sm:$0x1]
  %97 = vset.pattern.permute.xlu0 0
  %98 = vperm.xlu0 %97, %v59
  %v99 = vpop.permute.xlu0 %98
  %102 = vset.pattern.permute.xlu0 0
  %103 = vperm.xlu0 %102, %v74
  %v104 = vpop.permute.xlu0 %103
  %107 = vset.pattern.permute.xlu0 0
  %108 = vperm.xlu0 %107, %v89
  %v109 = vpop.permute.xlu0 %108
  %v111 = vmul.f32 %v93, %v99
  %v112 = vmul.f32 %v94, %v104
  %v113 = vmul.f32 %v95, %v109
  %s114 = scalar_lea.vmem %s1, 24
  %v115 = vld [vmem:[%s114] sm:$0xff]
  %v116 = vld [vmem:[%s114 + $0x8] sm:$0xff]
  %v117 = vld [vmem:[%s114 + $0x10] sm:$0x1]
  %118 = vset.pattern.permute.xlu0 1
  %119 = vperm.xlu0 %118, %v59
  %v120 = vpop.permute.xlu0 %119
  %122 = vset.pattern.permute.xlu0 1
  %123 = vperm.xlu0 %122, %v74
  %v124 = vpop.permute.xlu0 %123
  %126 = vset.pattern.permute.xlu0 1
  %127 = vperm.xlu0 %126, %v89
  %v128 = vpop.permute.xlu0 %127
  %v130 = vmul.f32 %v115, %v120
  %v131 = vmul.f32 %v116, %v124
  %v132 = vmul.f32 %v117, %v128
  %v133 = vadd.f32 %v111, %v130
  %v134 = vadd.f32 %v112, %v131
  %v135 = vadd.f32 %v113, %v132
  %s136 = scalar_lea.vmem %s1, 48
  %v137 = vld [vmem:[%s136] sm:$0xff]
  %v138 = vld [vmem:[%s136 + $0x8] sm:$0xff]
  %v139 = vld [vmem:[%s136 + $0x10] sm:$0x1]
  %140 = vset.pattern.permute.xlu0 2
  %141 = vperm.xlu0 %140, %v59
  %v142 = vpop.permute.xlu0 %141
  %144 = vset.pattern.permute.xlu0 2
  %145 = vperm.xlu0 %144, %v74
  %v146 = vpop.permute.xlu0 %145
  %148 = vset.pattern.permute.xlu0 2
  %149 = vperm.xlu0 %148, %v89
  %v150 = vpop.permute.xlu0 %149
  %v152 = vmul.f32 %v137, %v142
  %v153 = vmul.f32 %v138, %v146
  %v154 = vmul.f32 %v139, %v150
  %v155 = vadd.f32 %v133, %v152
  %v156 = vadd.f32 %v134, %v153
  %v157 = vadd.f32 %v135, %v154
  %s158 = scalar_lea.vmem %s1, 72
  %v159 = vld [vmem:[%s158] sm:$0xff]
  %v160 = vld [vmem:[%s158 + $0x8] sm:$0xff]
  %v161 = vld [vmem:[%s158 + $0x10] sm:$0x1]
  %162 = vset.pattern.permute.xlu0 3
  %163 = vperm.xlu0 %162, %v59
  %v164 = vpop.permute.xlu0 %163
  %166 = vset.pattern.permute.xlu0 3
  %167 = vperm.xlu0 %166, %v74
  %v168 = vpop.permute.xlu0 %167
  %170 = vset.pattern.permute.xlu0 3
  %171 = vperm.xlu0 %170, %v89
  %v172 = vpop.permute.xlu0 %171
  %v174 = vmul.f32 %v159, %v164
  %v175 = vmul.f32 %v160, %v168
  %v176 = vmul.f32 %v161, %v172
  %v177 = vadd.f32 %v155, %v174
  %v178 = vadd.f32 %v156, %v175
  %v179 = vadd.f32 %v157, %v176
  %vm180 = vcmask 146432
  %181 = vst.msk [vmem:[%s3] sm:$0xff] %vm180, %v177
  %182 = vst.msk [vmem:[%s3 + $0x8] sm:$0xff] %vm180, %v178
  %vm183 = vcmask 139264
  %184 = vst.msk [vmem:[%s3 + $0x10] sm:$0x1] %vm183, %v179
  // Predicated region
  $region10: #{_forward_jit.1} parent=0 // pred_check
    _
  $region11: #{_forward_jit.1} parent=0 // pred_check_branch
    %186 = sbr.rel (0) target = $region13
  $region12: #{_forward_jit.1} parent=0 // pred_region
    _
  $region13: #{_forward_jit.1} parent=0 // pred_fallthru
    _
  // Predicated region
  $region14: #{_forward_jit.1} parent=0 // pred_check
    _
  $region15: #{_forward_jit.1} parent=0 // pred_check_branch
    %188 = sbr.rel (0) target = $region17
  $region16: #{_forward_jit.1} parent=0 // pred_region
    _
  $region17: #{_forward_jit.1} parent=0 // pred_fallthru
    _
  // Predicated region
  $region18: #{_forward_jit.1} parent=0 // pred_check
    _
  $region19: #{_forward_jit.1} parent=0 // pred_check_branch
    %190 = sbr.rel (0) target = $region21
  $region20: #{_forward_jit.1} parent=0 // pred_region
    _
  $region21: #{_forward_jit.1} parent=0 // pred_fallthru
    _
  // Predicated region
  $region22: #{_forward_jit.1} parent=0 // pred_check
    _
  $region23: #{_forward_jit.1} parent=0 // pred_check_branch
    %192 = sbr.rel (0) target = $region25
  $region24: #{_forward_jit.1} parent=0 // pred_region
    _
  $region25: #{_forward_jit.1} parent=0 // pred_fallthru
    _

</llo_original>
